<compile_context>
chip_gen: v6e
topology: v6e:2x2x1
jax: 0.10.0
libtpu: 0.0.40
codegen_flags: <defaults>
</compile_context>

<pallas_src>
import jax
import jax.numpy as jnp
from jax.experimental import pallas as pl
from jax.experimental.pallas import tpu as pltpu


_LANE_WIDTH = 512          # lane-dense last dim (multiple of 128)
_MAX_BLOCK_ROWS = 1024     # 1024 x 512 x 4 B = 2 MiB per array per grid step
                           # -> ~16 MiB double-buffered VMEM across 4 streams


def _reparam_kernel(mean_ref, logvar_ref, eps_ref, out_ref):
    mean = mean_ref[...].astype(jnp.float32)
    std = jnp.exp(logvar_ref[...].astype(jnp.float32) * 0.5)   # EUP exp
    eps = eps_ref[...].astype(jnp.float32)
    out_ref[...] = (mean + std * eps).astype(out_ref.dtype)


def _lane_dense_layout(n_elems):
    """Pick a padded (rows, W) layout and block rows for `n_elems` elements."""
    w = _LANE_WIDTH
    rows = (n_elems + w - 1) // w
    if rows <= _MAX_BLOCK_ROWS:
        # Single block covering the whole (padded) array — no grid overhead.
        block_rows = rows
        rows_pad = rows
    else:
        block_rows = _MAX_BLOCK_ROWS                       # multiple of 8
        rows_pad = ((rows + block_rows - 1) // block_rows) * block_rows
    return rows_pad, w, block_rows


def _flatten_pad(x, rows_pad, w):
    flat = x.reshape(-1)
    pad = rows_pad * w - flat.shape[0]
    if pad:
        flat = jnp.pad(flat, (0, pad))
    return flat.reshape(rows_pad, w)


def reparametrize(z_mean, z_log_var, seed=0):
    """out = z_mean + exp(z_log_var / 2) * epsilon,  epsilon ~ N(0, 1)."""
    assert z_mean.shape == z_log_var.shape
    orig_shape = z_mean.shape
    out_dtype = z_mean.dtype
    n = z_mean.size

    rows_pad, w, block_rows = _lane_dense_layout(n)
    grid = (rows_pad // block_rows,)

    mean2d = _flatten_pad(z_mean, rows_pad, w)
    logvar2d = _flatten_pad(z_log_var, rows_pad, w)
    eps2d = jax.random.normal(jax.random.PRNGKey(seed), (rows_pad, w),
                              dtype=jnp.float32)

    block = pl.BlockSpec((block_rows, w), lambda i: (i, 0))
    out_shape = jax.ShapeDtypeStruct((rows_pad, w), out_dtype)

    n_pad = rows_pad * w
    out2d = pl.pallas_call(
        _reparam_kernel,
        out_shape=out_shape,
        grid=grid,
        in_specs=[block, block, block],
        out_specs=block,
        compiler_params=pltpu.CompilerParams(
            dimension_semantics=("parallel",),
            vmem_limit_bytes=32 * 1024 * 1024,
        ),
        cost_estimate=pl.CostEstimate(
            flops=3 * n_pad,
            transcendentals=n_pad,
            bytes_accessed=4 * n_pad * 4,
        ),
    )(mean2d, logvar2d, eps2d)

    return out2d.reshape(-1)[:n].reshape(orig_shape)


if __name__ == "__main__":
    key = jax.random.PRNGKey(0)
    k_mean, k_logvar = jax.random.split(key)

    B, D = 16, 128  # small VAE latent: 16 samples, 128-dim latent
    z_mean = jax.random.normal(k_mean, (B, D), dtype=jnp.float32)
    z_log_var = jax.random.normal(k_logvar, (B, D), dtype=jnp.float32)

    out = reparametrize(z_mean, z_log_var, seed=1234)
    out = jax.block_until_ready(out)

    # Sanity checks (epsilon is random, so verify the deterministic structure
    # statistically: recovered epsilon must look like N(0, 1)).
    assert out.shape == z_mean.shape and out.dtype == z_mean.dtype
    assert bool(jnp.all(jnp.isfinite(out))), "non-finite output"
    eps_hat = (out - z_mean) / jnp.exp(z_log_var * 0.5)
    m = float(jnp.mean(eps_hat))
    s = float(jnp.std(eps_hat))
    assert abs(m) < 0.15, f"epsilon mean off: {m}"
    assert 0.8 < s < 1.2, f"epsilon std off: {s}"

    print("KERNEL_OK")
</pallas_src>

<mosaic_0001>
module attributes {stable_mosaic.version = 11 : i64} {
  func.func @_reparam_kernel(%arg0: i32, %arg1: memref<4x512xf32, #tpu.memory_space<vmem>>, %arg2: memref<4x512xf32, #tpu.memory_space<vmem>>, %arg3: memref<4x512xf32, #tpu.memory_space<vmem>>, %arg4: memref<4x512xf32, #tpu.memory_space<vmem>>) attributes {dimension_semantics = [#tpu.dimension_semantics<parallel>], iteration_bounds = array<i64: 1>, scalar_prefetch = 0 : i64, scratch_operands = 0 : i64, tpu.core_type = #tpu.core_type<tc>, window_params = [{transform_indices = @transform_0, window_bounds = array<i64: 4, 512>}, {transform_indices = @transform_1, window_bounds = array<i64: 4, 512>}, {transform_indices = @transform_2, window_bounds = array<i64: 4, 512>}, {transform_indices = @transform_3, window_bounds = array<i64: 4, 512>}]} {
    %c0 = arith.constant 0 : index
    %c0_0 = arith.constant 0 : index
    %0 = vector.load %arg1[%c0, %c0_0] : memref<4x512xf32, #tpu.memory_space<vmem>>, vector<4x512xf32>
    %c0_1 = arith.constant 0 : index
    %c0_2 = arith.constant 0 : index
    %1 = vector.load %arg2[%c0_1, %c0_2] : memref<4x512xf32, #tpu.memory_space<vmem>>, vector<4x512xf32>
    %cst = arith.constant 5.000000e-01 : f32
    %2 = vector.broadcast %cst : f32 to vector<4x512xf32>
    %3 = arith.mulf %1, %2 : vector<4x512xf32>
    %4 = math.exp %3 : vector<4x512xf32>
    %c0_3 = arith.constant 0 : index
    %c0_4 = arith.constant 0 : index
    %5 = vector.load %arg3[%c0_3, %c0_4] : memref<4x512xf32, #tpu.memory_space<vmem>>, vector<4x512xf32>
    %6 = arith.mulf %4, %5 : vector<4x512xf32>
    %7 = arith.addf %0, %6 : vector<4x512xf32>
    %c0_5 = arith.constant 0 : index
    %c0_6 = arith.constant 0 : index
    %8 = vector.load %arg4[%c0_5, %c0_6] : memref<4x512xf32, #tpu.memory_space<vmem>>, vector<4x512xf32>
    tpu.vector_store %arg4[%c0_5, %c0_6], %7 {strides = array<i32>} : memref<4x512xf32, #tpu.memory_space<vmem>>, vector<4x512xf32>,
    return
  }
  func.func @transform_0(%arg0: i32) -> (i32, i32) {
    %c0_i32 = arith.constant 0 : i32
    %c0_i32_0 = arith.constant 0 : i32
    return %arg0, %c0_i32 : i32, i32
  }
  func.func @transform_1(%arg0: i32) -> (i32, i32) {
    %c0_i32 = arith.constant 0 : i32
    %c0_i32_0 = arith.constant 0 : i32
    return %arg0, %c0_i32 : i32, i32
  }
  func.func @transform_2(%arg0: i32) -> (i32, i32) {
    %c0_i32 = arith.constant 0 : i32
    %c0_i32_0 = arith.constant 0 : i32
    return %arg0, %c0_i32 : i32, i32
  }
  func.func @transform_3(%arg0: i32) -> (i32, i32) {
    %c0_i32 = arith.constant 0 : i32
    %c0_i32_0 = arith.constant 0 : i32
    return %arg0, %c0_i32 : i32, i32
  }
}

</mosaic_0001>

<llo_original>
// kernel: tpu_custom_call.1
$region0: #{tpu_custom_call.1}
  #allocation0 [shape = 'u32[]', space=smem, size = 0x4, offset = 0x4, fixed_abs, tag = 'smem constant byte address 0x4 - core index']
  #allocation1 [shape = 'u32[144,128]{1,0:T(1,128)}', space=vmem, size = 0x12000, scoped, tag = 'internal scratch']
  %s0 = inlined_call_operand.hbm [shape: f32[4,512], index: 0, kind: input, shape index: {}]
  %s1 = inlined_call_operand.hbm [shape: f32[4,512], index: 1, kind: input, shape index: {}]
  %s2 = inlined_call_operand.hbm [shape: f32[4,512], index: 2, kind: input, shape index: {}]
  %s3 = inlined_call_operand.hbm [shape: f32[4,512], index: 3, kind: output, shape index: {}]
  %s4 = sld [smem:[#allocation0]]
  $region34: #{tpu_custom_call.1} parent=0
    _
  %s6 = ssub.s32 1, %s4
  %s7 = scalar_select 0, %s6, %s4
  $region1: #{tpu_custom_call.1} parent=0
    #allocation2 [shape = 'u8[8192]{0}', space=vmem, size = 0x2000, scoped, tag = 'input window, operand 0, single buffered']
    #allocation3 [shape = 's32[1]{0}', space=sflag, size = 0x4, scoped, tag = 'scoped memory for tpu_custom_call.1']
    #allocation4 [shape = 's32[1]{0}', space=sflag, size = 0x4, scoped, tag = 'scoped memory for tpu_custom_call.1']
    #allocation5 [shape = 'u8[8192]{0}', space=vmem, size = 0x2000, scoped, tag = 'input window, operand 1, single buffered']
    #allocation6 [shape = 's32[1]{0}', space=sflag, size = 0x4, scoped, tag = 'scoped memory for tpu_custom_call.1']
    #allocation7 [shape = 'u8[8192]{0}', space=vmem, size = 0x2000, scoped, tag = 'input window, operand 2, single buffered']
    #allocation8 [shape = 'u8[8192]{0}', space=vmem, size = 0x2000, scoped, tag = 'output window, operand 0, single buffered']
    %8 = vsyncpa [#allocation3], 0
    %9 = vsyncpa [#allocation6], 0
    %10 = vsyncpa [#allocation4], 0
    // Predicated region
    $region2: #{tpu_custom_call.1} parent=1 // pred_check
      _
    $region3: #{tpu_custom_call.1} parent=1 // pred_check_branch
      %12 = sbr.rel (0) target = $region5
    $region4: #{tpu_custom_call.1} parent=1 // pred_region
      %s14 = ssub.s32 256, 256
      %15 = vsyncadd [#allocation3], %s14
      %s17 = sshll.u32 [#allocation2], 4
      %s18 = int_to_ptr.vmem [resolvable:$true] %s17
      %20 = dma.hbm_to_vmem [thread:$0]  %s0, 256, %s18, [#allocation3]
    $region5: #{tpu_custom_call.1} parent=1 // pred_fallthru
      _
    // Predicated region
    $region6: #{tpu_custom_call.1} parent=1 // pred_check
      _
    $region7: #{tpu_custom_call.1} parent=1 // pred_check_branch
      %22 = sbr.rel (0) target = $region9
    $region8: #{tpu_custom_call.1} parent=1 // pred_region
      %s24 = ssub.s32 256, 256
      %25 = vsyncadd [#allocation6], %s24
      %s27 = sshll.u32 [#allocation5], 4
      %s28 = int_to_ptr.vmem [resolvable:$true] %s27
      %30 = dma.hbm_to_vmem [thread:$0]  %s1, 256, %s28, [#allocation6]
    $region9: #{tpu_custom_call.1} parent=1 // pred_fallthru
      _
    // Predicated region
    $region10: #{tpu_custom_call.1} parent=1 // pred_check
      _
    $region11: #{tpu_custom_call.1} parent=1 // pred_check_branch
      %32 = sbr.rel (0) target = $region13
    $region12: #{tpu_custom_call.1} parent=1 // pred_region
      %s34 = ssub.s32 256, 256
      %35 = vsyncadd [#allocation6], %s34
      %s37 = sshll.u32 [#allocation7], 4
      %s38 = int_to_ptr.vmem [resolvable:$true] %s37
      %40 = dma.hbm_to_vmem [thread:$0]  %s2, 256, %s38, [#allocation6]
    $region13: #{tpu_custom_call.1} parent=1 // pred_fallthru
      _
    // Predicated region
    $region14: #{tpu_custom_call.1} parent=1 // pred_check
      _
    $region15: #{tpu_custom_call.1} parent=1 // pred_check_branch
      %42 = sbr.rel (0) target = $region17
    $region16: #{tpu_custom_call.1} parent=1 // pred_region
      %43 = dma.done [#allocation3], 256
    $region17: #{tpu_custom_call.1} parent=1 // pred_fallthru
      _
    // Predicated region
    $region18: #{tpu_custom_call.1} parent=1 // pred_check
      _
    $region19: #{tpu_custom_call.1} parent=1 // pred_check_branch
      %45 = sbr.rel (0) target = $region21
    $region20: #{tpu_custom_call.1} parent=1 // pred_region
      %46 = dma.done [#allocation6], 256
    $region21: #{tpu_custom_call.1} parent=1 // pred_fallthru
      _
    // Predicated region
    $region22: #{tpu_custom_call.1} parent=1 // pred_check
      _
    $region23: #{tpu_custom_call.1} parent=1 // pred_check_branch
      %48 = sbr.rel (0) target = $region25
    $region24: #{tpu_custom_call.1} parent=1 // pred_region
      %49 = dma.done [#allocation6], 256
    $region25: #{tpu_custom_call.1} parent=1 // pred_fallthru
      _
    %v50 = vld [vmem:[#allocation2] sm:$0xff]
    %v51 = vld [vmem:[#allocation2 + $0x8] sm:$0xff]
    %v52 = vld [vmem:[#allocation5] sm:$0xff]
    %v53 = vld [vmem:[#allocation5 + $0x8] sm:$0xff]
    %v54 = vmul.f32 %v52, 0.5
    %v55 = vmul.f32 %v53, 0.5
    %v56 = vmul.f32 %v54, 1.442695
    %v57 = vpow.pop %v56
    %v58 = vmul.f32 %v55, 1.442695
    %v59 = vpow.pop %v58
    %v60 = vld [vmem:[#allocation7] sm:$0xff]
    %v61 = vld [vmem:[#allocation7 + $0x8] sm:$0xff]
    %v62 = vmul.f32 %v57, %v60
    %v63 = vmul.f32 %v59, %v61
    %v64 = vadd.f32 %v50, %v62
    %v65 = vadd.f32 %v51, %v63
    %66 = vst [vmem:[#allocation8] sm:$0xff] %v64
    %67 = vst [vmem:[#allocation8 + $0x8] sm:$0xff] %v65
    // Predicated region
    $region26: #{tpu_custom_call.1} parent=1 // pred_check
      _
    $region27: #{tpu_custom_call.1} parent=1 // pred_check_branch
      %69 = sbr.rel (0) target = $region29
    $region28: #{tpu_custom_call.1} parent=1 // pred_region
      %s71 = ssub.s32 256, 256
      %72 = vsyncadd [#allocation4], %s71
      %s74 = sshll.u32 [#allocation8], 4
      %s75 = int_to_ptr.vmem [resolvable:$true] %s74
      %77 = dma.vmem_to_hbm [thread:$0]  %s75, 256, %s3, [#allocation4]
    $region29: #{tpu_custom_call.1} parent=1 // pred_fallthru
      _
    // Predicated region
    $region30: #{tpu_custom_call.1} parent=1 // pred_check
      _
    $region31: #{tpu_custom_call.1} parent=1 // pred_check_branch
      %79 = sbr.rel (0) target = $region33
    $region32: #{tpu_custom_call.1} parent=1 // pred_region
      %80 = dma.done [#allocation4], 256
    $region33: #{tpu_custom_call.1} parent=1 // pred_fallthru
      _
    %81 = vsyncpa [#allocation3], 1
    %82 = vsyncpa [#allocation6], 1
    %83 = vsyncpa [#allocation4], 1

</llo_original>
